<compile_context>
chip_gen: v5e
topology: v5e:2x2
jax: 0.10.0
libtpu: 0.0.40
codegen_flags: <defaults>
</compile_context>

<pallas_src>
import jax
import jax.numpy as jnp
from jax import lax
from jax.experimental import pallas as pl
from jax.experimental.pallas import tpu as pltpu

_LANE = 128


def _embed_kernel(p_ref, w_ref, bias_ref, cls_ref, o_ref):
    """One block of `bt` images per grid step.

    p_ref:    (bt, S, K)   bf16 patch matrix; row 0 of each image is zeros
    w_ref:    (K, N)       bf16 projection weight (VMEM-resident, const map)
    bias_ref: (1, N)       f32 conv bias          (VMEM-resident, const map)
    cls_ref:  (1, N)       f32 cls token          (VMEM-resident, const map)
    o_ref:    (bt, S, N)   output block; row 0 = cls, rows 1.. = patch embeds
    """
    bt, s, _ = p_ref.shape
    n = w_ref.shape[1]
    bias = bias_ref[...]                                   # (1, N) f32
    cls = cls_ref[...]                                     # (1, N) f32
    # Row-0 selector (cls slot) -- iota + compare only, plain VPU select.
    is_cls_row = lax.broadcasted_iota(jnp.int32, (s, n), 0) == 0
    # Static unroll over the images in this block: bt aligned (S,K)x(K,N) MXU
    # matmuls, each followed by one aligned full-slab store (no offset-1
    # stores: the zero row-0 trick puts the result at row 0 already, and the
    # cls token replaces that row AFTER the bias add).
    for b in range(bt):
        acc = jnp.dot(p_ref[b], w_ref[...],
                      preferred_element_type=jnp.float32)  # (S, N) f32
        out = jnp.where(is_cls_row, cls, acc + bias)
        o_ref[b] = out.astype(o_ref.dtype)


def embeddings_forward(x, conv_w, conv_b, cls_token, patch_size, *,
                       bt=None, compute_dtype=jnp.bfloat16, out_dtype=None):
    """Forward pass of Embeddings.

    x:         (B, C, H, W)        NCHW activation
    conv_w:    (hidden, C, ph, pw) Conv2d weight (stride == kernel)
    conv_b:    (hidden,)           Conv2d bias
    cls_token: (1, 1, hidden)
    returns:   (B, n_patches + 1, hidden) in x.dtype (or out_dtype)
    """
    B, C, H, W = x.shape
    ph, pw = patch_size
    gh, gw = H // ph, W // pw
    n_patches = gh * gw
    hidden = conv_w.shape[0]
    K = C * ph * pw
    S = n_patches + 1
    out_dtype = x.dtype if out_dtype is None else out_dtype

    # Images per grid step.  Amortizes per-step overhead; keeps the grid >= 2
    # (even when possible) so v7x's 2 TensorCores split the batch.  bt=8 keeps
    # ViT-base blocks (~15 MiB with double buffering) inside v7x's 64 MiB VMEM;
    # v5e/v6e (128 MiB) can go larger after raising vmem_limit_bytes.
    if bt is None:
        bt = max(1, min(8, pl.cdiv(B, 2)))
    pad_b = (-B) % bt
    B_pad = B + pad_b
    grid_b = B_pad // bt

    # Lane-dense output: pad hidden to a multiple of 128 if needed
    # (ViT sizes 768/1024 already satisfy this; demo uses 128).
    n_pad = (-hidden) % _LANE
    N = hidden + n_pad

    # im2col for a stride==kernel conv, fused with the bf16 downcast so the
    # materialized patch matrix is half-width.  Column order (C, ph, pw)
    # matches the flattened Conv2d weight.
    # TODO(synk): do this rearrange in-kernel via manual DMA to drop the extra
    # HBM pass (kernel is HBM-bound on all generations).
    patches = x.reshape(B, C, gh, ph, gw, pw).transpose(0, 2, 4, 1, 3, 5)
    patches = patches.reshape(B, n_patches, K).astype(compute_dtype)
    # Zero row 0 per image (cls slot) + zero-pad batch to a multiple of bt.
    patches = jnp.pad(patches, ((0, pad_b), (1, 0), (0, 0)))

    # TODO(synk): in a jit'd model this transpose/cast constant-folds; hoist it
    # if called eagerly so it is not a per-call pass over the weight.
    w = conv_w.reshape(hidden, K).T.astype(compute_dtype)       # (K, hidden)
    bias = conv_b.reshape(1, hidden).astype(jnp.float32)        # (1, hidden)
    cls = cls_token.reshape(1, hidden).astype(jnp.float32)      # (1, hidden)
    if n_pad:
        w = jnp.pad(w, ((0, 0), (0, n_pad)))
        bias = jnp.pad(bias, ((0, 0), (0, n_pad)))
        cls = jnp.pad(cls, ((0, 0), (0, n_pad)))

    isz = lambda dt: jnp.dtype(dt).itemsize
    cost = pl.CostEstimate(
        flops=2 * B_pad * S * K * N,
        transcendentals=0,
        bytes_accessed=(B_pad * S * K * isz(compute_dtype)      # patches
                        + K * N * isz(compute_dtype)            # weight
                        + 2 * N * 4                             # bias + cls
                        + B_pad * S * N * isz(out_dtype)),      # output
    )

    emb = pl.pallas_call(
        _embed_kernel,
        out_shape=jax.ShapeDtypeStruct((B_pad, S, N), out_dtype),
        grid_spec=pltpu.PrefetchScalarGridSpec(
            num_scalar_prefetch=0,
            grid=(grid_b,),
            in_specs=[
                pl.BlockSpec((bt, S, K), lambda i: (i, 0, 0)),   # patches
                # TODO(synk): pipeline_mode=pl.Buffered(1) on the three
                # constant-index-map operands below would drop their second
                # VMEM buffer (~K*N bytes each); left at the default for
                # compile safety.
                pl.BlockSpec((K, N), lambda i: (0, 0)),          # weight (resident)
                pl.BlockSpec((1, N), lambda i: (0, 0)),          # bias   (resident)
                pl.BlockSpec((1, N), lambda i: (0, 0)),          # cls    (resident)
            ],
            out_specs=pl.BlockSpec((bt, S, N), lambda i: (i, 0, 0)),
        ),
        compiler_params=pltpu.CompilerParams(
            dimension_semantics=("parallel",),   # batch-block axis -> megacore
            # 32 MiB covers ViT-base at bt=8 with double buffering and stays
            # inside v7x's 64 MiB physical VMEM; raise on v5e/v6e (128 MiB)
            # if bt is pushed higher.
            vmem_limit_bytes=32 * 1024 * 1024,
        ),
        cost_estimate=cost,
    )(patches, w, bias, cls)

    if pad_b:
        emb = emb[:B]
    if n_pad:
        emb = emb[..., :hidden]
    return emb


if __name__ == "__main__":
    # Small config consistent with the module: img_size=16, patch_size=4,
    # in_channels=3, hidden_size=128 (lane-dense) -> n_patches=16, S=17.
    # B=8 with bt=4 -> grid of 2 even steps (both v7x TensorCores busy).
    B, C, H, W = 8, 3, 16, 16
    ph, pw = 4, 4
    hidden = 128

    key = jax.random.PRNGKey(0)
    k_x, k_w, k_b, k_c = jax.random.split(key, 4)

    x = jax.random.normal(k_x, (B, C, H, W), dtype=jnp.float32)
    conv_w = jax.random.normal(k_w, (hidden, C, ph, pw), dtype=jnp.float32) * 0.02
    conv_b = jax.random.normal(k_b, (hidden,), dtype=jnp.float32) * 0.02
    cls_token = jax.random.normal(k_c, (1, 1, hidden), dtype=jnp.float32) * 0.02

    emb = embeddings_forward(x, conv_w, conv_b, cls_token, (ph, pw))
    emb = jax.block_until_ready(emb)

    # Reference: plain-JAX conv with the same semantics as PyTorch Conv2d (f32).
    ref_conv = jax.lax.conv_general_dilated(
        x, conv_w, window_strides=(ph, pw), padding="VALID",
        dimension_numbers=("NCHW", "OIHW", "NCHW"),
    ) + conv_b.reshape(1, hidden, 1, 1)
    ref = ref_conv.reshape(B, hidden, -1).transpose(0, 2, 1)
    ref = jnp.concatenate([jnp.broadcast_to(cls_token, (B, 1, hidden)), ref], axis=1)

    n_patches = (H // ph) * (W // pw)
    assert emb.shape == (B, n_patches + 1, hidden), emb.shape
    # bf16 matmul inputs with f32 accumulation vs f32 reference -> loose-ish tol.
    assert jnp.allclose(emb, ref, atol=2e-2, rtol=2e-2)
    print("KERNEL_OK")
</pallas_src>

<mosaic_0001>
module attributes {stable_mosaic.version = 11 : i64} {
  func.func @_embed_kernel(%arg0: i32, %arg1: memref<4x17x48xbf16, #tpu.memory_space<vmem>>, %arg2: memref<48x128xbf16, #tpu.memory_space<vmem>>, %arg3: memref<1x128xf32, #tpu.memory_space<vmem>>, %arg4: memref<1x128xf32, #tpu.memory_space<vmem>>, %arg5: memref<4x17x128xf32, #tpu.memory_space<vmem>>) attributes {dimension_semantics = [#tpu.dimension_semantics<parallel>], iteration_bounds = array<i64: 2>, scalar_prefetch = 0 : i64, scratch_operands = 0 : i64, tpu.core_type = #tpu.core_type<tc>, window_params = [{transform_indices = @transform_0, window_bounds = array<i64: 4, 17, 48>}, {pipeline_mode = #tpu.pipeline_mode<synchronous>, transform_indices = @transform_1, window_bounds = array<i64: 48, 128>}, {pipeline_mode = #tpu.pipeline_mode<synchronous>, transform_indices = @transform_2, window_bounds = array<i64: 1, 128>}, {pipeline_mode = #tpu.pipeline_mode<synchronous>, transform_indices = @transform_3, window_bounds = array<i64: 1, 128>}, {transform_indices = @transform_4, window_bounds = array<i64: 4, 17, 128>}]} {
    %c0 = arith.constant 0 : index
    %c0_0 = arith.constant 0 : index
    %0 = vector.load %arg3[%c0, %c0_0] : memref<1x128xf32, #tpu.memory_space<vmem>>, vector<1x128xf32>
    %c0_1 = arith.constant 0 : index
    %c0_2 = arith.constant 0 : index
    %1 = vector.load %arg4[%c0_1, %c0_2] : memref<1x128xf32, #tpu.memory_space<vmem>>, vector<1x128xf32>
    %2 = tpu.iota {dimensions = array<i32: 0>} : vector<17x128xi32>
    %c0_i32 = arith.constant 0 : i32
    %3 = vector.broadcast %c0_i32 : i32 to vector<17x128xi32>
    %4 = arith.cmpi eq, %2, %3 : vector<17x128xi32>
    %c0_3 = arith.constant 0 : index
    %c0_4 = arith.constant 0 : index
    %c0_5 = arith.constant 0 : index
    %5 = vector.load %arg1[%c0_3, %c0_4, %c0_5] : memref<4x17x48xbf16, #tpu.memory_space<vmem>>, vector<1x17x48xbf16>
    %6 = vector.shape_cast %5 : vector<1x17x48xbf16> to vector<17x48xbf16>
    %c0_6 = arith.constant 0 : index
    %c0_7 = arith.constant 0 : index
    %7 = vector.load %arg2[%c0_6, %c0_7] : memref<48x128xbf16, #tpu.memory_space<vmem>>, vector<48x128xbf16>
    %cst = arith.constant dense<0.000000e+00> : vector<17x128xf32>
    %8 = tpu.matmul %6, %7, %cst {dimension_numbers = #tpu.dot_dimension_numbers<[1], [0], [0], [1], [0, 0, 1, 1], [], []>} : vector<17x48xbf16>, vector<48x128xbf16>, vector<17x128xf32> -> vector<17x128xf32>
    %9 = vector.broadcast %0 : vector<1x128xf32> to vector<17x128xf32>
    %10 = arith.addf %8, %9 : vector<17x128xf32>
    %11 = vector.shape_cast %1 : vector<1x128xf32> to vector<1x128xf32>
    %12 = vector.broadcast %11 : vector<1x128xf32> to vector<17x128xf32>
    %13 = arith.select %4, %12, %10 : vector<17x128xi1>, vector<17x128xf32>
    %c0_8 = arith.constant 0 : index
    %c0_9 = arith.constant 0 : index
    %c0_10 = arith.constant 0 : index
    %14 = vector.load %arg5[%c0_8, %c0_9, %c0_10] : memref<4x17x128xf32, #tpu.memory_space<vmem>>, vector<1x17x128xf32>
    %15 = vector.shape_cast %14 : vector<1x17x128xf32> to vector<17x128xf32>
    %16 = vector.shape_cast %13 : vector<17x128xf32> to vector<1x17x128xf32>
    tpu.vector_store %arg5[%c0_8, %c0_9, %c0_10], %16 {strides = array<i32>} : memref<4x17x128xf32, #tpu.memory_space<vmem>>, vector<1x17x128xf32>,
    %c1 = arith.constant 1 : index
    %c0_11 = arith.constant 0 : index
    %c0_12 = arith.constant 0 : index
    %17 = vector.load %arg1[%c1, %c0_11, %c0_12] : memref<4x17x48xbf16, #tpu.memory_space<vmem>>, vector<1x17x48xbf16>
    %18 = vector.shape_cast %17 : vector<1x17x48xbf16> to vector<17x48xbf16>
    %c0_13 = arith.constant 0 : index
    %c0_14 = arith.constant 0 : index
    %19 = vector.load %arg2[%c0_13, %c0_14] : memref<48x128xbf16, #tpu.memory_space<vmem>>, vector<48x128xbf16>
    %cst_15 = arith.constant dense<0.000000e+00> : vector<17x128xf32>
    %20 = tpu.matmul %18, %19, %cst_15 {dimension_numbers = #tpu.dot_dimension_numbers<[1], [0], [0], [1], [0, 0, 1, 1], [], []>} : vector<17x48xbf16>, vector<48x128xbf16>, vector<17x128xf32> -> vector<17x128xf32>
    %21 = vector.broadcast %0 : vector<1x128xf32> to vector<17x128xf32>
    %22 = arith.addf %20, %21 : vector<17x128xf32>
    %23 = vector.shape_cast %1 : vector<1x128xf32> to vector<1x128xf32>
    %24 = vector.broadcast %23 : vector<1x128xf32> to vector<17x128xf32>
    %25 = arith.select %4, %24, %22 : vector<17x128xi1>, vector<17x128xf32>
    %c1_16 = arith.constant 1 : index
    %c0_17 = arith.constant 0 : index
    %c0_18 = arith.constant 0 : index
    %26 = vector.load %arg5[%c1_16, %c0_17, %c0_18] : memref<4x17x128xf32, #tpu.memory_space<vmem>>, vector<1x17x128xf32>
    %27 = vector.shape_cast %26 : vector<1x17x128xf32> to vector<17x128xf32>
    %28 = vector.shape_cast %25 : vector<17x128xf32> to vector<1x17x128xf32>
    tpu.vector_store %arg5[%c1_16, %c0_17, %c0_18], %28 {strides = array<i32>} : memref<4x17x128xf32, #tpu.memory_space<vmem>>, vector<1x17x128xf32>,
    %c2 = arith.constant 2 : index
    %c0_19 = arith.constant 0 : index
    %c0_20 = arith.constant 0 : index
    %29 = vector.load %arg1[%c2, %c0_19, %c0_20] : memref<4x17x48xbf16, #tpu.memory_space<vmem>>, vector<1x17x48xbf16>
    %30 = vector.shape_cast %29 : vector<1x17x48xbf16> to vector<17x48xbf16>
    %c0_21 = arith.constant 0 : index
    %c0_22 = arith.constant 0 : index
    %31 = vector.load %arg2[%c0_21, %c0_22] : memref<48x128xbf16, #tpu.memory_space<vmem>>, vector<48x128xbf16>
    %cst_23 = arith.constant dense<0.000000e+00> : vector<17x128xf32>
    %32 = tpu.matmul %30, %31, %cst_23 {dimension_numbers = #tpu.dot_dimension_numbers<[1], [0], [0], [1], [0, 0, 1, 1], [], []>} : vector<17x48xbf16>, vector<48x128xbf16>, vector<17x128xf32> -> vector<17x128xf32>
    %33 = vector.broadcast %0 : vector<1x128xf32> to vector<17x128xf32>
    %34 = arith.addf %32, %33 : vector<17x128xf32>
    %35 = vector.shape_cast %1 : vector<1x128xf32> to vector<1x128xf32>
    %36 = vector.broadcast %35 : vector<1x128xf32> to vector<17x128xf32>
    %37 = arith.select %4, %36, %34 : vector<17x128xi1>, vector<17x128xf32>
    %c2_24 = arith.constant 2 : index
    %c0_25 = arith.constant 0 : index
    %c0_26 = arith.constant 0 : index
    %38 = vector.load %arg5[%c2_24, %c0_25, %c0_26] : memref<4x17x128xf32, #tpu.memory_space<vmem>>, vector<1x17x128xf32>
    %39 = vector.shape_cast %38 : vector<1x17x128xf32> to vector<17x128xf32>
    %40 = vector.shape_cast %37 : vector<17x128xf32> to vector<1x17x128xf32>
    tpu.vector_store %arg5[%c2_24, %c0_25, %c0_26], %40 {strides = array<i32>} : memref<4x17x128xf32, #tpu.memory_space<vmem>>, vector<1x17x128xf32>,
    %c3 = arith.constant 3 : index
    %c0_27 = arith.constant 0 : index
    %c0_28 = arith.constant 0 : index
    %41 = vector.load %arg1[%c3, %c0_27, %c0_28] : memref<4x17x48xbf16, #tpu.memory_space<vmem>>, vector<1x17x48xbf16>
    %42 = vector.shape_cast %41 : vector<1x17x48xbf16> to vector<17x48xbf16>
    %c0_29 = arith.constant 0 : index
    %c0_30 = arith.constant 0 : index
    %43 = vector.load %arg2[%c0_29, %c0_30] : memref<48x128xbf16, #tpu.memory_space<vmem>>, vector<48x128xbf16>
    %cst_31 = arith.constant dense<0.000000e+00> : vector<17x128xf32>
    %44 = tpu.matmul %42, %43, %cst_31 {dimension_numbers = #tpu.dot_dimension_numbers<[1], [0], [0], [1], [0, 0, 1, 1], [], []>} : vector<17x48xbf16>, vector<48x128xbf16>, vector<17x128xf32> -> vector<17x128xf32>
    %45 = vector.broadcast %0 : vector<1x128xf32> to vector<17x128xf32>
    %46 = arith.addf %44, %45 : vector<17x128xf32>
    %47 = vector.shape_cast %1 : vector<1x128xf32> to vector<1x128xf32>
    %48 = vector.broadcast %47 : vector<1x128xf32> to vector<17x128xf32>
    %49 = arith.select %4, %48, %46 : vector<17x128xi1>, vector<17x128xf32>
    %c3_32 = arith.constant 3 : index
    %c0_33 = arith.constant 0 : index
    %c0_34 = arith.constant 0 : index
    %50 = vector.load %arg5[%c3_32, %c0_33, %c0_34] : memref<4x17x128xf32, #tpu.memory_space<vmem>>, vector<1x17x128xf32>
    %51 = vector.shape_cast %50 : vector<1x17x128xf32> to vector<17x128xf32>
    %52 = vector.shape_cast %49 : vector<17x128xf32> to vector<1x17x128xf32>
    tpu.vector_store %arg5[%c3_32, %c0_33, %c0_34], %52 {strides = array<i32>} : memref<4x17x128xf32, #tpu.memory_space<vmem>>, vector<1x17x128xf32>,
    return
  }
  func.func @transform_0(%arg0: i32) -> (i32, i32, i32) {
    %c0_i32 = arith.constant 0 : i32
    %c0_i32_0 = arith.constant 0 : i32
    %c0_i32_1 = arith.constant 0 : i32
    return %arg0, %c0_i32, %c0_i32_0 : i32, i32, i32
  }
  func.func @transform_1(%arg0: i32) -> (i32, i32) {
    %c0_i32 = arith.constant 0 : i32
    %c0_i32_0 = arith.constant 0 : i32
    %c0_i32_1 = arith.constant 0 : i32
    return %c0_i32, %c0_i32_0 : i32, i32
  }
  func.func @transform_2(%arg0: i32) -> (i32, i32) {
    %c0_i32 = arith.constant 0 : i32
    %c0_i32_0 = arith.constant 0 : i32
    %c0_i32_1 = arith.constant 0 : i32
    return %c0_i32, %c0_i32_0 : i32, i32
  }
  func.func @transform_3(%arg0: i32) -> (i32, i32) {
    %c0_i32 = arith.constant 0 : i32
    %c0_i32_0 = arith.constant 0 : i32
    %c0_i32_1 = arith.constant 0 : i32
    return %c0_i32, %c0_i32_0 : i32, i32
  }
  func.func @transform_4(%arg0: i32) -> (i32, i32, i32) {
    %c0_i32 = arith.constant 0 : i32
    %c0_i32_0 = arith.constant 0 : i32
    %c0_i32_1 = arith.constant 0 : i32
    return %arg0, %c0_i32, %c0_i32_0 : i32, i32, i32
  }
}

</mosaic_0001>

<llo_original>
// kernel: tpu_custom_call.1
$region0: #{tpu_custom_call.1}
  #allocation0 [shape = 'u32[]', space=smem, size = 0x4, offset = 0x4, fixed_abs, tag = 'smem constant byte address 0x4 - core index']
  #allocation1 [shape = 'u32[72,128]{1,0:T(1,128)}', space=vmem, size = 0x9000, scoped, tag = 'internal scratch']
  %s0 = inlined_call_operand.vmem [shape: bf16[8,17,48], index: 0, kind: input, shape index: {}]
  %s1 = inlined_call_operand.vmem [shape: bf16[48,128], index: 1, kind: input, shape index: {}]
  %s2 = inlined_call_operand.vmem [shape: f32[1,128], index: 2, kind: input, shape index: {}]
  %s3 = inlined_call_operand.vmem [shape: f32[1,128], index: 3, kind: input, shape index: {}]
  %s4 = inlined_call_operand.vmem [shape: f32[8,17,128], index: 4, kind: output, shape index: {}]
  %s5 = sld [smem:[#allocation0]]
  $region49: #{tpu_custom_call.1} parent=0
    _
  %s7 = ssub.s32 1, %s5
  %s8 = scalar_select 0, %s7, %s5
  loop: start=0, step=1, limit=4
  $region2: #{tpu_custom_call.1} parent=0 // loop_pre_header
    _
  $region3: #{tpu_custom_call.1} parent=0 // loop_header
    %s10 = sphi 0, %s14
    %p11 = scmp.ge.s32.totalorder %s10, 4
    %s20 = sphi 0, %s22
    %s23 = sphi 0, %s20
    %s24 = sphi 0, %s23
    %s40 = sphi 0, %s24
    %s44 = sphi 0, %s44
    %s46 = sphi 0, %s44
    %s47 = sphi 0, %s46
    %s61 = sphi 0, %s47
    %s65 = sphi 0, %s65
    %s67 = sphi 0, %s65
    %s68 = sphi 0, %s67
    %s82 = sphi 0, %s68
    %s86 = sphi 0, %s86
    %s88 = sphi 0, %s86
    %s89 = sphi 0, %s88
    %s103 = sphi 0, %s89
    %s109 = sphi 0, %s111
    %s112 = sphi 0, %s109
    %s113 = sphi 0, %s112
    %s129 = sphi 0, %s113
  $region4: #{tpu_custom_call.1} parent=0 // loop_header_branch
    %13 = sbr.rel (%p11) target = $region8
  $region5: #{tpu_custom_call.1} parent=0 // loop_body
    %s15 = ssub.s32 %s10, 1
    %s16 = ssub.s32 %s10, 2
    %s17 = sadd.s32 %s10, 1
    %s18 = ssub.s32 %s10, %s17
    %p19 = scmp.eq.s32.totalorder %s18, 0
    %s21 = sadd.s32 %s20, 1
    %s22 = scalar_select %p19, %s20, %s21
    %p25 = pneg %p19
    %p26 = scmp.eq.s32.totalorder %s10, 1
    %p27 = por %p25, %p26
    %p28 = scmp.ne.s32.totalorder %s20, %s23
    %p29 = scmp.eq.s32.totalorder %s10, 0
    %p30 = por %p28, %p29
    %p31 = scmp.ne.s32.totalorder %s20, %s23
    %p32 = scmp.eq.s32.totalorder %s15, 1
    %p33 = por %p31, %p32
    %p34 = scmp.ne.s32.totalorder %s23, %s24
    %p35 = scmp.eq.s32.totalorder %s15, 0
    %p36 = por %p34, %p35
    %p37 = scmp.ne.s32.totalorder %s23, %s24
    %p38 = scmp.eq.s32.totalorder %s16, 1
    %p39 = por %p37, %p38
    %p41 = scmp.ne.s32.totalorder %s24, %s40
    %p42 = scmp.eq.s32.totalorder %s16, 0
    %p43 = por %p41, %p42
    %s45 = sadd.s32 %s44, 1
    %p48 = scmp.eq.s32.totalorder %s10, 1
    %p49 = scmp.ne.s32.totalorder %s44, %s46
    %p50 = scmp.eq.s32.totalorder %s10, 0
    %p51 = por %p49, %p50
    %p52 = scmp.ne.s32.totalorder %s44, %s46
    %p53 = scmp.eq.s32.totalorder %s15, 1
    %p54 = por %p52, %p53
    %p55 = scmp.ne.s32.totalorder %s46, %s47
    %p56 = scmp.eq.s32.totalorder %s15, 0
    %p57 = por %p55, %p56
    %p58 = scmp.ne.s32.totalorder %s46, %s47
    %p59 = scmp.eq.s32.totalorder %s16, 1
    %p60 = por %p58, %p59
    %p62 = scmp.ne.s32.totalorder %s47, %s61
    %p63 = scmp.eq.s32.totalorder %s16, 0
    %p64 = por %p62, %p63
    %s66 = sadd.s32 %s65, 1
    %p69 = scmp.eq.s32.totalorder %s10, 1
    %p70 = scmp.ne.s32.totalorder %s65, %s67
    %p71 = scmp.eq.s32.totalorder %s10, 0
    %p72 = por %p70, %p71
    %p73 = scmp.ne.s32.totalorder %s65, %s67
    %p74 = scmp.eq.s32.totalorder %s15, 1
    %p75 = por %p73, %p74
    %p76 = scmp.ne.s32.totalorder %s67, %s68
    %p77 = scmp.eq.s32.totalorder %s15, 0
    %p78 = por %p76, %p77
    %p79 = scmp.ne.s32.totalorder %s67, %s68
    %p80 = scmp.eq.s32.totalorder %s16, 1
    %p81 = por %p79, %p80
    %p83 = scmp.ne.s32.totalorder %s68, %s82
    %p84 = scmp.eq.s32.totalorder %s16, 0
    %p85 = por %p83, %p84
    %s87 = sadd.s32 %s86, 1
    %p90 = scmp.eq.s32.totalorder %s10, 1
    %p91 = scmp.ne.s32.totalorder %s86, %s88
    %p92 = scmp.eq.s32.totalorder %s10, 0
    %p93 = por %p91, %p92
    %p94 = scmp.ne.s32.totalorder %s86, %s88
    %p95 = scmp.eq.s32.totalorder %s15, 1
    %p96 = por %p94, %p95
    %p97 = scmp.ne.s32.totalorder %s88, %s89
    %p98 = scmp.eq.s32.totalorder %s15, 0
    %p99 = por %p97, %p98
    %p100 = scmp.ne.s32.totalorder %s88, %s89
    %p101 = scmp.eq.s32.totalorder %s16, 1
    %p102 = por %p100, %p101
    %p104 = scmp.ne.s32.totalorder %s89, %s103
    %p105 = scmp.eq.s32.totalorder %s16, 0
    %p106 = por %p104, %p105
    %s107 = ssub.s32 %s10, %s17
    %p108 = scmp.eq.s32.totalorder %s107, 0
    %s110 = sadd.s32 %s109, 1
    %s111 = scalar_select %p108, %s109, %s110
    %p114 = pneg %p108
    %p115 = scmp.eq.s32.totalorder %s10, 1
    %p116 = por %p114, %p115
    %p117 = scmp.ne.s32.totalorder %s109, %s112
    %p118 = scmp.eq.s32.totalorder %s10, 0
    %p119 = por %p117, %p118
    %p120 = scmp.ne.s32.totalorder %s109, %s112
    %p121 = scmp.eq.s32.totalorder %s15, 1
    %p122 = por %p120, %p121
    %p123 = scmp.ne.s32.totalorder %s112, %s113
    %p124 = scmp.eq.s32.totalorder %s15, 0
    %p125 = por %p123, %p124
    %p126 = scmp.ne.s32.totalorder %s112, %s113
    %p127 = scmp.eq.s32.totalorder %s16, 1
    %p128 = por %p126, %p127
    %p130 = scmp.ne.s32.totalorder %s113, %s129
    %p131 = scmp.eq.s32.totalorder %s16, 0
    %p132 = por %p130, %p131
    %p133 = scmp.le.s32.totalorder 1, %s10
    %p134 = scmp.lt.s32.totalorder %s10, 3
    %p135 = pnand %p133, %p134
    %p136 = pneg %p135
    // Predicated region
    $region9: #{tpu_custom_call.1} parent=5 // pred_check
      _
    $region10: #{tpu_custom_call.1} parent=5 // pred_check_branch
      %138 = sbr.rel (%p135) target = $region12
    $region11: #{tpu_custom_call.1} parent=5 // pred_region
      %s139 = ssub.s32 %s10, 1
      // Predicated region
      $region13: #{tpu_custom_call.1} parent=11 // pred_check
        %p140 = pneg %p57
      $region14: #{tpu_custom_call.1} parent=11 // pred_check_branch
        %142 = sbr.rel (%p140) target = $region16
      $region15: #{tpu_custom_call.1} parent=11 // pred_region
        _
      $region16: #{tpu_custom_call.1} parent=11 // pred_fallthru
        _
      // Predicated region
      $region17: #{tpu_custom_call.1} parent=11 // pred_check
        %p143 = pneg %p78
      $region18: #{tpu_custom_call.1} parent=11 // pred_check_branch
        %145 = sbr.rel (%p143) target = $region20
      $region19: #{tpu_custom_call.1} parent=11 // pred_region
        _
      $region20: #{tpu_custom_call.1} parent=11 // pred_fallthru
        _
      // Predicated region
      $region21: #{tpu_custom_call.1} parent=11 // pred_check
        %p146 = pneg %p99
      $region22: #{tpu_custom_call.1} parent=11 // pred_check_branch
        %148 = sbr.rel (%p146) target = $region24
      $region23: #{tpu_custom_call.1} parent=11 // pred_region
        _
      $region24: #{tpu_custom_call.1} parent=11 // pred_fallthru
        _
    $region12: #{tpu_custom_call.1} parent=5 // pred_fallthru
      _
    %p149 = scmp.lt.s32.totalorder %s10, 2
    // Predicated region
    $region25: #{tpu_custom_call.1} parent=5 // pred_check
      %p150 = pneg %p149
    $region26: #{tpu_custom_call.1} parent=5 // pred_check_branch
      %152 = sbr.rel (%p150) target = $region28
    $region27: #{tpu_custom_call.1} parent=5 // pred_region
      // Predicated region
      $region29: #{tpu_custom_call.1} parent=27 // pred_check
        %p153 = pneg %p30
      $region30: #{tpu_custom_call.1} parent=27 // pred_check_branch
        %155 = sbr.rel (%p153) target = $region32
      $region31: #{tpu_custom_call.1} parent=27 // pred_region
        %s156 = smul.u32 4, %s10
        %p157 = scmp.lt.s32.totalorder %s156, 7
        %s158 = scalar_select %p157, %s156, 7
        %s159 = smul.addr %s158, 3
        %s160 = smul.addr %s159, 4
        %s161 = scalar_lea.vmem %s0, %s160
        %s162 = smul.u32 4, %s10
      $region32: #{tpu_custom_call.1} parent=27 // pred_fallthru
        _
    $region28: #{tpu_custom_call.1} parent=5 // pred_fallthru
      _
    %p163 = scmp.le.s32.totalorder 1, %s10
    %p164 = scmp.lt.s32.totalorder %s10, 3
    %p165 = pnand %p163, %p164
    %p166 = pneg %p165
    // Predicated region
    $region33: #{tpu_custom_call.1} parent=5 // pred_check
      _
    $region34: #{tpu_custom_call.1} parent=5 // pred_check_branch
      %168 = sbr.rel (%p165) target = $region36
    $region35: #{tpu_custom_call.1} parent=5 // pred_region
      %s169 = ssub.s32 %s10, 1
      %s170 = smul.u32 4, %s15
      %p171 = scmp.lt.s32.totalorder %s170, 7
      %s172 = scalar_select %p171, %s170, 7
      %s173 = smul.addr %s172, 3
      %s174 = smul.addr %s173, 4
      %s175 = scalar_lea.vmem %s0, %s174
      %p176 = pneg %p36
      %p177 = pneg %p33
      %p178 = pneg %p57
      %p179 = pneg %p54
      %p180 = pneg %p78
      %p181 = pneg %p75
      %p182 = pneg %p99
      %p183 = pneg %p96
      %p184 = pneg %p125
      %p185 = pneg %p122
      %s186 = smul.u32 4, %s15
      %p187 = scmp.lt.s32.totalorder %s186, 7
      %s188 = scalar_select %p187, %s186, 7
      %s189 = smul.addr %s188, 3
      %s190 = smul.addr %s189, 8
      %s191 = scalar_lea.vmem %s4, %s190
      %s192 = smul.u32 4, %s15
      %p193 = scmp.lt.s32.totalorder %s192, 7
      %s194 = scalar_select %p193, %s192, 7
      %s195 = smul.addr %s194, 3
      %s196 = smul.addr %s195, 4
      %s197 = scalar_lea.vmem %s0, %s196
      %s198 = smul.u32 4, %s15
      %s199 = smul.u32 4, %s15
      %p200 = scmp.lt.s32.totalorder %s199, 7
      %s201 = scalar_select %p200, %s199, 7
      %s202 = smul.addr %s201, 3
      %s203 = smul.addr %s202, 8
      %s204 = scalar_lea.vmem %s4, %s203
      %s205 = smul.u32 4, %s15
      %v207 = vld [vmem:[%s2] sm:$0x1]
      %v208 = vld [vmem:[%s3] sm:$0x1]
      %v209 = vlaneseq
      %v210 = vshrl.u32 %v209, 7
      %v211 = vadd.s32 %v210, 8
      %v212 = vadd.s32 %v210, 16
      %vm213 = vcmp.eq.s32.totalorder %v210, 0
      %vm214 = vcmp.eq.s32.totalorder %v211, 0
      %vm215 = vcmp.eq.s32.totalorder %v212, 0
      %v216 = vld [vmem:[%s197] sm:$0xf]
      %v217 = vld [vmem:[%s197 + $0x4] sm:$0xf]
      %v218 = vld [vmem:[%s197 + $0x8] sm:$0x1]
      %v219 = vld [vmem:[%s1] sm:$0xf]
      %v220 = vld [vmem:[%s1 + $0x4] sm:$0xf]
      %v221 = vld [vmem:[%s1 + $0x8] sm:$0xf]
      %v222 = vld [vmem:[%s1 + $0xc] sm:$0xf]
      %v223 = vld [vmem:[%s1 + $0x10] sm:$0xf]
      %v224 = vld [vmem:[%s1 + $0x14] sm:$0xf]
      %v226 = vperm.slane %v207, 0
      %v231 = vunpack.c.l.b16 %v216
      %v232 = vunpack.c.l.b16 %v217
      %v233 = vunpack.c.l.b16 %v218
      %v234 = vpack.c.b16 %v232, %v231
      %v235 = vpack.c.b16 %v233, %v233
      %v242 = vunpack.c.l.b16 %v219
      %v243 = vunpack.c.l.b16 %v220
      %v244 = vunpack.c.l.b16 %v221
      %v245 = vunpack.c.l.b16 %v222
      %v246 = vunpack.c.l.b16 %v223
      %v247 = vunpack.c.l.b16 %v224
      %v248 = vpack.c.b16 %v243, %v242
      %v249 = vpack.c.b16 %v245, %v244
      %v250 = vpack.c.b16 %v247, %v246
      %vm254 = vcmask 392192
      %v256 = vsel %vm254, %v234, 0
      %v259 = vsel %vm254, %v235, 0
      %261 = vmatpush.bf16.msra.mxu0 0
      %262 = vmatpush.bf16.msra.mxu0 0
      %263 = vmatpush.bf16.msra.mxu0 0
      %264 = vmatpush.bf16.msra.mxu0 0
      %265 = vmatpush.bf16.msra.mxu0 0
      %266 = vmatpush.bf16.msra.mxu0 %v250
      %267 = vmatpush.bf16.msra.mxu0 %v249
      %268 = vmatpush.bf16.msra.mxu0 %v248
      %269 = vmatmul.bf16.gmra.mxu0 %v256
      %v270 = vpop.f32.mrf.mxu0
      %v271 = vadd.f32 %v226, %v270
      %v272 = vpop.f32.mrf.mxu0
      %v273 = vadd.f32 %v226, %v272
      %274 = vmatmul.bf16.gmra.mxu0 %v259
      %v275 = vpop.f32.mrf.mxu0
      %v276 = vadd.f32 %v226, %v275
      %v277 = vpop.f32.mrf.mxu0
      %278 = vdwg.mxu0
      %v280 = vperm.slane %v208, 0
      %v282 = vsel %vm213, %v280, %v271
      %v283 = vsel %vm214, %v280, %v273
      %v284 = vsel %vm215, %v280, %v276
      %285 = vst [vmem:[%s204] sm:$0xff] %v282
      %286 = vst [vmem:[%s204 + $0x8] sm:$0xff] %v283
      %287 = vst [vmem:[%s204 + $0x10] sm:$0x1] %v284
      %s288 = scalar_lea.vmem %s197, 12
      %v289 = vld [vmem:[%s288] sm:$0xf]
      %v290 = vld [vmem:[%s288 + $0x4] sm:$0xf]
      %v291 = vld [vmem:[%s288 + $0x8] sm:$0x1]
      %v292 = vld [vmem:[%s1] sm:$0xf]
      %v293 = vld [vmem:[%s1 + $0x4] sm:$0xf]
      %v294 = vld [vmem:[%s1 + $0x8] sm:$0xf]
      %v295 = vld [vmem:[%s1 + $0xc] sm:$0xf]
      %v296 = vld [vmem:[%s1 + $0x10] sm:$0xf]
      %v297 = vld [vmem:[%s1 + $0x14] sm:$0xf]
      %v301 = vunpack.c.l.b16 %v289
      %v302 = vunpack.c.l.b16 %v290
      %v303 = vunpack.c.l.b16 %v291
      %v304 = vpack.c.b16 %v302, %v301
      %v305 = vpack.c.b16 %v303, %v303
      %v312 = vunpack.c.l.b16 %v292
      %v313 = vunpack.c.l.b16 %v293
      %v314 = vunpack.c.l.b16 %v294
      %v315 = vunpack.c.l.b16 %v295
      %v316 = vunpack.c.l.b16 %v296
      %v317 = vunpack.c.l.b16 %v297
      %v318 = vpack.c.b16 %v313, %v312
      %v319 = vpack.c.b16 %v315, %v314
      %v320 = vpack.c.b16 %v317, %v316
      %v325 = vsel %vm254, %v304, 0
      %v328 = vsel %vm254, %v305, 0
      %330 = vmatpush.bf16.msra.mxu0 0
      %331 = vmatpush.bf16.msra.mxu0 0
      %332 = vmatpush.bf16.msra.mxu0 0
      %333 = vmatpush.bf16.msra.mxu0 0
      %334 = vmatpush.bf16.msra.mxu0 0
      %335 = vmatpush.bf16.msra.mxu0 %v320
      %336 = vmatpush.bf16.msra.mxu0 %v319
      %337 = vmatpush.bf16.msra.mxu0 %v318
      %338 = vmatmul.bf16.gmra.mxu0 %v325
      %v339 = vpop.f32.mrf.mxu0
      %v340 = vadd.f32 %v226, %v339
      %v341 = vpop.f32.mrf.mxu0
      %v342 = vadd.f32 %v226, %v341
      %343 = vmatmul.bf16.gmra.mxu0 %v328
      %v344 = vpop.f32.mrf.mxu0
      %v345 = vadd.f32 %v226, %v344
      %v346 = vpop.f32.mrf.mxu0
      %347 = vdwg.mxu0
      %v348 = vsel %vm213, %v280, %v340
      %v349 = vsel %vm214, %v280, %v342
      %v350 = vsel %vm215, %v280, %v345
      %s351 = scalar_lea.vmem %s204, 24
      %352 = vst [vmem:[%s351] sm:$0xff] %v348
      %353 = vst [vmem:[%s351 + $0x8] sm:$0xff] %v349
      %354 = vst [vmem:[%s351 + $0x10] sm:$0x1] %v350
      %s355 = scalar_lea.vmem %s197, 24
      %v356 = vld [vmem:[%s355] sm:$0xf]
      %v357 = vld [vmem:[%s355 + $0x4] sm:$0xf]
      %v358 = vld [vmem:[%s355 + $0x8] sm:$0x1]
      %v359 = vld [vmem:[%s1] sm:$0xf]
      %v360 = vld [vmem:[%s1 + $0x4] sm:$0xf]
      %v361 = vld [vmem:[%s1 + $0x8] sm:$0xf]
      %v362 = vld [vmem:[%s1 + $0xc] sm:$0xf]
      %v363 = vld [vmem:[%s1 + $0x10] sm:$0xf]
      %v364 = vld [vmem:[%s1 + $0x14] sm:$0xf]
      %v368 = vunpack.c.l.b16 %v356
      %v369 = vunpack.c.l.b16 %v357
      %v370 = vunpack.c.l.b16 %v358
      %v371 = vpack.c.b16 %v369, %v368
      %v372 = vpack.c.b16 %v370, %v370
      %v379 = vunpack.c.l.b16 %v359
      %v380 = vunpack.c.l.b16 %v360
      %v381 = vunpack.c.l.b16 %v361
      %v382 = vunpack.c.l.b16 %v362
      %v383 = vunpack.c.l.b16 %v363
      %v384 = vunpack.c.l.b16 %v364
      %v385 = vpack.c.b16 %v380, %v379
      %v386 = vpack.c.b16 %v382, %v381
      %v387 = vpack.c.b16 %v384, %v383
      %v392 = vsel %vm254, %v371, 0
      %v395 = vsel %vm254, %v372, 0
      %397 = vmatpush.bf16.msra.mxu0 0
      %398 = vmatpush.bf16.msra.mxu0 0
      %399 = vmatpush.bf16.msra.mxu0 0
      %400 = vmatpush.bf16.msra.mxu0 0
      %401 = vmatpush.bf16.msra.mxu0 0
      %402 = vmatpush.bf16.msra.mxu0 %v387
      %403 = vmatpush.bf16.msra.mxu0 %v386
      %404 = vmatpush.bf16.msra.mxu0 %v385
      %405 = vmatmul.bf16.gmra.mxu0 %v392
      %v406 = vpop.f32.mrf.mxu0
      %v407 = vadd.f32 %v226, %v406
      %v408 = vpop.f32.mrf.mxu0
      %v409 = vadd.f32 %v226, %v408
      %410 = vmatmul.bf16.gmra.mxu0 %v395
      %v411 = vpop.f32.mrf.mxu0
      %v412 = vadd.f32 %v226, %v411
      %v413 = vpop.f32.mrf.mxu0
      %414 = vdwg.mxu0
      %v415 = vsel %vm213, %v280, %v407
      %v416 = vsel %vm214, %v280, %v409
      %v417 = vsel %vm215, %v280, %v412
      %s418 = scalar_lea.vmem %s204, 48
      %419 = vst [vmem:[%s418] sm:$0xff] %v415
      %420 = vst [vmem:[%s418 + $0x8] sm:$0xff] %v416
      %421 = vst [vmem:[%s418 + $0x10] sm:$0x1] %v417
      %s422 = scalar_lea.vmem %s197, 36
      %v423 = vld [vmem:[%s422] sm:$0xf]
      %v424 = vld [vmem:[%s422 + $0x4] sm:$0xf]
      %v425 = vld [vmem:[%s422 + $0x8] sm:$0x1]
      %v426 = vld [vmem:[%s1] sm:$0xf]
      %v427 = vld [vmem:[%s1 + $0x4] sm:$0xf]
      %v428 = vld [vmem:[%s1 + $0x8] sm:$0xf]
      %v429 = vld [vmem:[%s1 + $0xc] sm:$0xf]
      %v430 = vld [vmem:[%s1 + $0x10] sm:$0xf]
      %v431 = vld [vmem:[%s1 + $0x14] sm:$0xf]
      %v435 = vunpack.c.l.b16 %v423
      %v436 = vunpack.c.l.b16 %v424
      %v437 = vunpack.c.l.b16 %v425
      %v438 = vpack.c.b16 %v436, %v435
      %v439 = vpack.c.b16 %v437, %v437
      %v446 = vunpack.c.l.b16 %v426
      %v447 = vunpack.c.l.b16 %v427
      %v448 = vunpack.c.l.b16 %v428
      %v449 = vunpack.c.l.b16 %v429
      %v450 = vunpack.c.l.b16 %v430
      %v451 = vunpack.c.l.b16 %v431
      %v452 = vpack.c.b16 %v447, %v446
      %v453 = vpack.c.b16 %v449, %v448
      %v454 = vpack.c.b16 %v451, %v450
      %v459 = vsel %vm254, %v438, 0
      %v462 = vsel %vm254, %v439, 0
      %464 = vmatpush.bf16.msra.mxu0 0
      %465 = vmatpush.bf16.msra.mxu0 0
      %466 = vmatpush.bf16.msra.mxu0 0
      %467 = vmatpush.bf16.msra.mxu0 0
      %468 = vmatpush.bf16.msra.mxu0 0
      %469 = vmatpush.bf16.msra.mxu0 %v454
      %470 = vmatpush.bf16.msra.mxu0 %v453
      %471 = vmatpush.bf16.msra.mxu0 %v452
      %472 = vmatmul.bf16.gmra.mxu0 %v459
      %v473 = vpop.f32.mrf.mxu0
      %v474 = vadd.f32 %v226, %v473
      %v475 = vpop.f32.mrf.mxu0
      %v476 = vadd.f32 %v226, %v475
      %477 = vmatmul.bf16.gmra.mxu0 %v462
      %v478 = vpop.f32.mrf.mxu0
      %v479 = vadd.f32 %v226, %v478
      %v480 = vpop.f32.mrf.mxu0
      %481 = vdwg.mxu0
      %v482 = vsel %vm213, %v280, %v474
      %v483 = vsel %vm214, %v280, %v476
      %v484 = vsel %vm215, %v280, %v479
      %s485 = scalar_lea.vmem %s204, 72
      %486 = vst [vmem:[%s485] sm:$0xff] %v482
      %487 = vst [vmem:[%s485 + $0x8] sm:$0xff] %v483
      %488 = vst [vmem:[%s485 + $0x10] sm:$0x1] %v484
      %s489 = smul.u32 4, %s15
      %p490 = scmp.lt.s32.totalorder %s489, 7
      %s491 = scalar_select %p490, %s489, 7
      %s492 = smul.addr %s491, 3
      %s493 = smul.addr %s492, 8
      %s494 = scalar_lea.vmem %s4, %s493
      // Predicated region
      $region37: #{tpu_custom_call.1} parent=35 // pred_check
        %p495 = pneg %p122
      $region38: #{tpu_custom_call.1} parent=35 // pred_check_branch
        %497 = sbr.rel (%p495) target = $region40
      $region39: #{tpu_custom_call.1} parent=35 // pred_region
        %s498 = smul.u32 4, %s15
      $region40: #{tpu_custom_call.1} parent=35 // pred_fallthru
        _
    $region36: #{tpu_custom_call.1} parent=5 // pred_fallthru
      _
    %p499 = scmp.le.s32.totalorder 2, %s10
    // Predicated region
    $region41: #{tpu_custom_call.1} parent=5 // pred_check
      %p500 = pneg %p499
    $region42: #{tpu_custom_call.1} parent=5 // pred_check_branch
      %502 = sbr.rel (%p500) target = $region44
    $region43: #{tpu_custom_call.1} parent=5 // pred_region
      %s503 = ssub.s32 %s10, 2
      // Predicated region
      $region45: #{tpu_custom_call.1} parent=43 // pred_check
        %p504 = pneg %p128
      $region46: #{tpu_custom_call.1} parent=43 // pred_check_branch
        %506 = sbr.rel (%p504) target = $region48
      $region47: #{tpu_custom_call.1} parent=43 // pred_region
        %s507 = smul.u32 4, %s16
        %p508 = scmp.lt.s32.totalorder %s507, 7
        %s509 = scalar_select %p508, %s507, 7
        %s510 = smul.addr %s509, 3
        %s511 = smul.addr %s510, 8
        %s512 = scalar_lea.vmem %s4, %s511
      $region48: #{tpu_custom_call.1} parent=43 // pred_fallthru
        _
    $region44: #{tpu_custom_call.1} parent=5 // pred_fallthru
      _
  $region6: #{tpu_custom_call.1} parent=0 // loop_footer
    %s14 = sadd.s32 1, %s10
  $region7: #{tpu_custom_call.1} parent=0 // loop_footer_branch
    %9 = sbr.rel target = $region3
  $region8: #{tpu_custom_call.1} parent=0 // loop_exit
    _

</llo_original>
